<compile_context>
chip_gen: v7x
topology: tpu7x:2x2x1
jax: 0.10.0
libtpu: 0.0.40
codegen_flags: <defaults>
</compile_context>

<pallas_src>
import jax
import jax.numpy as jnp
from jax.experimental import pallas as pl
from jax.experimental.pallas import tpu as pltpu


def _round_up(x: int, m: int) -> int:
    return ((x + m - 1) // m) * m


def _choose_tb(batch: int, block_b: int) -> int:
    """Batch tile: multiple of 8 (f32 sublane), <= block_b, preferring
    (a) a tile that divides the 8-rounded batch exactly (no padding) and
    (b) >= 2 grid steps when the batch allows (v7x has 2 TensorCores)."""
    b8 = _round_up(max(batch, 1), 8)
    cap = max(8, min(_round_up(block_b, 8), b8))
    if b8 <= cap:
        half = b8 // 2
        if half >= 8 and half % 8 == 0:
            return half            # 2 grid steps, still no padding
        return b8                  # single step (tiny batch)
    for t in range(cap, 7, -8):    # largest tile <= cap that divides b8
        if b8 % t == 0:
            return t
    return cap                     # fall back to padding


_VMEM_SOFT_BUDGET = 24 * 1024 * 1024   # headroom under v7x's 32 MiB scoped default


def _vmem_estimate(tb, d, in_itemsize, widths, param_bytes):
    dma_in = 2 * 2 * tb * d * in_itemsize            # xf/xr blocks, double-buffered
    dma_out = 2 * tb * 4                             # (tb, 1) f32 output block
    act = 4 * (2 * tb) * max([d] + list(widths)) * 4  # live-value headroom (f32)
    return dma_in + dma_out + act + 2 * param_bytes


def _make_ddg_kernel(num_hidden: int, tb: int, compute_dtype):
    """Kernel ref order:
        xf, xr, (w0, b0, ..., w_{nh-1}, b_{nh-1}, head_row), out
    Hidden weights are compute_dtype (in, out); biases f32 (1, out);
    head_row f32 (1, K_last) already scaled by 0.5."""

    def kernel(*refs):
        xf_ref, xr_ref = refs[0], refs[1]
        param_refs = refs[2:-1]
        out_ref = refs[-1]

        # Fused twin towers: ONE (2*tb, D) activation.  Concat in f32 (always
        # sublane-aligned for tb % 8 == 0), then cast to the matmul dtype
        # on-chip -- no wrapper-side pad/cast HBM pass.
        x = jnp.concatenate(
            [xf_ref[...].astype(jnp.float32), xr_ref[...].astype(jnp.float32)],
            axis=0)
        h = x.astype(compute_dtype)

        for i in range(num_hidden):
            w = param_refs[2 * i][...]        # (in, out)  compute_dtype (MXU operand)
            b = param_refs[2 * i + 1][...]    # (1, out)   f32
            acc = jnp.dot(h, w, preferred_element_type=jnp.float32) + b
            acc = jnp.maximum(acc, 0.0)       # ReLU (f32, VPU); dropout == identity
            # Cast back to the matmul dtype only if another matmul consumes it.
            h = acc.astype(compute_dtype) if i + 1 < num_hidden else acc

        # Head (out_dim == 1): VPU multiply + lane reduce instead of an N=1 MXU
        # matmul.  (f - r)/2 == (h_f - h_r) @ (0.5*w_head); the head bias
        # cancels and the 0.5 is pre-folded into head_row in the wrapper.
        head_row = param_refs[2 * num_hidden][...]               # (1, K_last) f32
        hf32 = h if h.dtype == jnp.float32 else h.astype(jnp.float32)
        s = jnp.sum(hf32 * head_row, axis=-1, keepdims=True)     # (2*tb, 1) f32
        out_ref[...] = s[:tb] - s[tb:]                           # (tb, 1)

    return kernel


def ddg_predictor_pallas(xf, xr, params, num_hidden, *,
                         block_b: int = 2048,
                         compute_dtype=jnp.bfloat16):
    """params: list of (W, b) with W pre-transposed to (in_dim, out_dim) and b
    shaped (1, out_dim).  The last pair is the head: W (in_dim, 1), b (1, 1).
    compute_dtype controls the hidden matmul operand dtype (bf16 default;
    use jnp.float32 if bf16 rounding of the twin-tower difference matters)."""
    B, D = xf.shape

    # Hidden layers: compute_dtype weights (MXU operands), f32 biases.
    flat = []
    for w, b in params[:num_hidden]:
        flat.append(w.astype(compute_dtype))
        flat.append(b.reshape(1, -1).astype(jnp.float32))
    # Head weight as an f32 row, pre-scaled by 0.5 (head bias cancels in the
    # (f - r)/2 difference, so it is not needed inside the kernel).
    wh, _bh = params[num_hidden]
    flat.append((0.5 * wh).reshape(1, -1).astype(jnp.float32))

    param_bytes = sum(int(p.size) * p.dtype.itemsize for p in flat)
    widths = [w.shape[1] for w, _ in params]
    in_itemsize = jnp.dtype(xf.dtype).itemsize

    # Batch tile: big (overhead-bound at small tiles), no-pad / >=2-step aware,
    # clamped under a conservative VMEM soft budget.
    tb = _choose_tb(B, block_b)
    while tb > 8 and _vmem_estimate(tb, D, in_itemsize, widths, param_bytes) \
            > _VMEM_SOFT_BUDGET:
        tb = max(8, (tb // 2 // 8) * 8)

    b_pad = _round_up(B, tb)
    n_grid = b_pad // tb

    # Only pad when unavoidable (B not a multiple of the chosen tile).
    if b_pad != B:
        pad = ((0, b_pad - B), (0, 0))
        xf = jnp.pad(xf, pad)
        xr = jnp.pad(xr, pad)

    x_spec = pl.BlockSpec((tb, D), lambda i: (i, 0))
    const_specs = [pl.BlockSpec(p.shape, lambda i: (0, 0)) for p in flat]
    out_spec = pl.BlockSpec((tb, 1), lambda i: (i, 0))

    est = _vmem_estimate(tb, D, in_itemsize, widths, param_bytes)
    cp_kwargs = dict(dimension_semantics=("parallel",))
    if est > 12 * 1024 * 1024:
        # Raise the scoped limit explicitly (with headroom) only when needed;
        # the default limits (16 MiB v5e / 32 MiB v6e+v7x) cover the toy sizes.
        cp_kwargs["vmem_limit_bytes"] = int(min(2 * est, 48 * 1024 * 1024))

    out = pl.pallas_call(
        _make_ddg_kernel(num_hidden, tb, compute_dtype),
        out_shape=jax.ShapeDtypeStruct((b_pad, 1), jnp.float32),
        grid=(n_grid,),
        in_specs=[x_spec, x_spec] + const_specs,
        out_specs=out_spec,
        compiler_params=pltpu.CompilerParams(**cp_kwargs),
    )(xf, xr, *flat)

    return out if b_pad == B else out[:B]


def ddg_predictor_ref_f32(xf, xr, params, num_hidden):
    """Pure-f32 JAX reference (eval-mode dropout = identity)."""
    hp = jax.lax.Precision.HIGHEST

    def tower(x):
        h = x
        for w, b in params[:num_hidden]:
            h = jnp.maximum(jnp.dot(h, w, precision=hp) + b, 0.0)
        wh, bh = params[num_hidden]
        return jnp.dot(h, wh, precision=hp) + bh

    return (tower(xf) - tower(xr)) * 0.5


def ddg_predictor_ref_mixed(xf, xr, params, num_hidden):
    """Reference mimicking the kernel's default precision path: bf16 matmul
    operands, f32 accumulation / elementwise, f32 head reduce."""
    def hidden(x):
        h = x.astype(jnp.bfloat16)
        for i, (w, b) in enumerate(params[:num_hidden]):
            acc = jnp.dot(h, w.astype(jnp.bfloat16),
                          preferred_element_type=jnp.float32) + b
            acc = jnp.maximum(acc, 0.0)
            h = acc.astype(jnp.bfloat16) if i + 1 < num_hidden else acc
        return h.astype(jnp.float32)

    wh, _bh = params[num_hidden]
    return hidden(xf) @ (0.5 * wh) - hidden(xr) @ (0.5 * wh)


def init_params(key, input_dim, hidden_dim, num_hidden):
    """nn.Linear-style init; weights stored pre-transposed as (in_dim, out_dim),
    biases as (1, out_dim)."""
    params = []
    dims = []
    in_dim = input_dim
    for i in range(num_hidden):
        out_dim = hidden_dim // (2 ** i)
        dims.append((in_dim, out_dim))
        in_dim = out_dim
    dims.append((in_dim, 1))  # head

    keys = jax.random.split(key, 2 * len(dims))
    for j, (din, dout) in enumerate(dims):
        bound = 1.0 / jnp.sqrt(float(din))
        w = jax.random.uniform(keys[2 * j], (din, dout), jnp.float32,
                               minval=-bound, maxval=bound)
        b = jax.random.uniform(keys[2 * j + 1], (1, dout), jnp.float32,
                               minval=-bound, maxval=bound)
        params.append((w, b))
    return params


if __name__ == "__main__":
    # Shapes consistent with the module's forward: two feature matrices
    # (forward / reverse) of shape (batch, input_dim).
    batch = 8
    input_dim = 32
    hidden_dim = 32
    num_hidden = 2          # Linear(32,32)+ReLU, Linear(32,16)+ReLU, head Linear(16,1)
    dropout_rate = 0.1      # identity at inference

    key = jax.random.PRNGKey(0)
    k_xf, k_xr, k_p = jax.random.split(key, 3)
    xf = jax.random.normal(k_xf, (batch, input_dim), jnp.float32)
    xr = jax.random.normal(k_xr, (batch, input_dim), jnp.float32)

    params = init_params(k_p, input_dim, hidden_dim, num_hidden)

    # Default (bf16 MXU operands, f32 accumulation).
    out_bf16 = jax.block_until_ready(
        ddg_predictor_pallas(xf, xr, params, num_hidden))
    # Full-f32 compute path for precision-sensitive ddG values.
    out_f32 = jax.block_until_ready(
        ddg_predictor_pallas(xf, xr, params, num_hidden,
                             compute_dtype=jnp.float32))

    assert out_bf16.shape == (batch, 1), out_bf16.shape
    assert out_f32.shape == (batch, 1), out_f32.shape

    ref_mixed = ddg_predictor_ref_mixed(xf, xr, params, num_hidden)
    ref_f32 = ddg_predictor_ref_f32(xf, xr, params, num_hidden)

    # Tight check vs the same mixed-precision path; loose check vs pure f32
    # (bf16 matmul operands shift results beyond 1e-5 of the f32 reference).
    assert jnp.allclose(out_bf16, ref_mixed, atol=2e-3, rtol=2e-3), (out_bf16, ref_mixed)
    assert jnp.allclose(out_bf16, ref_f32, atol=5e-2, rtol=5e-2), (out_bf16, ref_f32)
    # The f32-compute kernel tracks the f32 reference much more closely.
    assert jnp.allclose(out_f32, ref_f32, atol=2e-2, rtol=2e-2), (out_f32, ref_f32)

    print("KERNEL_OK")
</pallas_src>

<mosaic_0001>
module attributes {stable_mosaic.version = 11 : i64} {
  func.func @kernel(%arg0: i32, %arg1: memref<8x32xf32, #tpu.memory_space<vmem>>, %arg2: memref<8x32xf32, #tpu.memory_space<vmem>>, %arg3: memref<32x32xbf16, #tpu.memory_space<vmem>>, %arg4: memref<1x32xf32, #tpu.memory_space<vmem>>, %arg5: memref<32x16xbf16, #tpu.memory_space<vmem>>, %arg6: memref<1x16xf32, #tpu.memory_space<vmem>>, %arg7: memref<1x16xf32, #tpu.memory_space<vmem>>, %arg8: memref<8x1xf32, #tpu.memory_space<vmem>>) attributes {dimension_semantics = [#tpu.dimension_semantics<parallel>], iteration_bounds = array<i64: 1>, scalar_prefetch = 0 : i64, scratch_operands = 0 : i64, tpu.core_type = #tpu.core_type<tc>, window_params = [{transform_indices = @transform_0, window_bounds = array<i64: 8, 32>}, {transform_indices = @transform_1, window_bounds = array<i64: 8, 32>}, {pipeline_mode = #tpu.pipeline_mode<synchronous>, transform_indices = @transform_2, window_bounds = array<i64: 32, 32>}, {pipeline_mode = #tpu.pipeline_mode<synchronous>, transform_indices = @transform_3, window_bounds = array<i64: 1, 32>}, {pipeline_mode = #tpu.pipeline_mode<synchronous>, transform_indices = @transform_4, window_bounds = array<i64: 32, 16>}, {pipeline_mode = #tpu.pipeline_mode<synchronous>, transform_indices = @transform_5, window_bounds = array<i64: 1, 16>}, {pipeline_mode = #tpu.pipeline_mode<synchronous>, transform_indices = @transform_6, window_bounds = array<i64: 1, 16>}, {transform_indices = @transform_7, window_bounds = array<i64: 8, 1>}]} {
    %c0 = arith.constant 0 : index
    %c0_0 = arith.constant 0 : index
    %0 = vector.load %arg1[%c0, %c0_0] : memref<8x32xf32, #tpu.memory_space<vmem>>, vector<8x32xf32>
    %c0_1 = arith.constant 0 : index
    %c0_2 = arith.constant 0 : index
    %1 = vector.load %arg2[%c0_1, %c0_2] : memref<8x32xf32, #tpu.memory_space<vmem>>, vector<8x32xf32>
    %2 = tpu.concatenate %0, %1 in 0 : vector<8x32xf32>, vector<8x32xf32> -> vector<16x32xf32>
    %3 = arith.truncf %2 : vector<16x32xf32> to vector<16x32xbf16>
    %c0_3 = arith.constant 0 : index
    %c0_4 = arith.constant 0 : index
    %4 = vector.load %arg3[%c0_3, %c0_4] : memref<32x32xbf16, #tpu.memory_space<vmem>>, vector<32x32xbf16>
    %c0_5 = arith.constant 0 : index
    %c0_6 = arith.constant 0 : index
    %5 = vector.load %arg4[%c0_5, %c0_6] : memref<1x32xf32, #tpu.memory_space<vmem>>, vector<1x32xf32>
    %cst = arith.constant dense<0.000000e+00> : vector<16x32xf32>
    %6 = tpu.matmul %3, %4, %cst {dimension_numbers = #tpu.dot_dimension_numbers<[1], [0], [0], [1], [0, 0, 1, 1], [], []>} : vector<16x32xbf16>, vector<32x32xbf16>, vector<16x32xf32> -> vector<16x32xf32>
    %7 = vector.broadcast %5 : vector<1x32xf32> to vector<16x32xf32>
    %8 = arith.addf %6, %7 : vector<16x32xf32>
    %cst_7 = arith.constant 0.000000e+00 : f32
    %9 = vector.broadcast %cst_7 : f32 to vector<16x32xf32>
    %10 = arith.maximumf %8, %9 : vector<16x32xf32>
    %11 = arith.truncf %10 : vector<16x32xf32> to vector<16x32xbf16>
    %c0_8 = arith.constant 0 : index
    %c0_9 = arith.constant 0 : index
    %12 = vector.load %arg5[%c0_8, %c0_9] : memref<32x16xbf16, #tpu.memory_space<vmem>>, vector<32x16xbf16>
    %c0_10 = arith.constant 0 : index
    %c0_11 = arith.constant 0 : index
    %13 = vector.load %arg6[%c0_10, %c0_11] : memref<1x16xf32, #tpu.memory_space<vmem>>, vector<1x16xf32>
    %cst_12 = arith.constant dense<0.000000e+00> : vector<16x16xf32>
    %14 = tpu.matmul %11, %12, %cst_12 {dimension_numbers = #tpu.dot_dimension_numbers<[1], [0], [0], [1], [0, 0, 1, 1], [], []>} : vector<16x32xbf16>, vector<32x16xbf16>, vector<16x16xf32> -> vector<16x16xf32>
    %15 = vector.broadcast %13 : vector<1x16xf32> to vector<16x16xf32>
    %16 = arith.addf %14, %15 : vector<16x16xf32>
    %cst_13 = arith.constant 0.000000e+00 : f32
    %17 = vector.broadcast %cst_13 : f32 to vector<16x16xf32>
    %18 = arith.maximumf %16, %17 : vector<16x16xf32>
    %c0_14 = arith.constant 0 : index
    %c0_15 = arith.constant 0 : index
    %19 = vector.load %arg7[%c0_14, %c0_15] : memref<1x16xf32, #tpu.memory_space<vmem>>, vector<1x16xf32>
    %20 = vector.broadcast %19 : vector<1x16xf32> to vector<16x16xf32>
    %21 = arith.mulf %18, %20 : vector<16x16xf32>
    %cst_16 = arith.constant dense<0.000000e+00> : vector<16xf32>
    %22 = vector.multi_reduction <add>, %21, %cst_16 [1] : vector<16x16xf32> to vector<16xf32>
    %23 = vector.shape_cast %22 : vector<16xf32> to vector<16x1xf32>
    %24 = vector.extract_strided_slice %23 {offsets = [0, 0], sizes = [8, 1], strides = [1, 1]} : vector<16x1xf32> to vector<8x1xf32>
    %25 = vector.extract_strided_slice %23 {offsets = [8, 0], sizes = [8, 1], strides = [1, 1]} : vector<16x1xf32> to vector<8x1xf32>
    %26 = arith.subf %24, %25 : vector<8x1xf32>
    %c0_17 = arith.constant 0 : index
    %c0_18 = arith.constant 0 : index
    %27 = vector.load %arg8[%c0_17, %c0_18] : memref<8x1xf32, #tpu.memory_space<vmem>>, vector<8x1xf32>
    tpu.vector_store %arg8[%c0_17, %c0_18], %26 {strides = array<i32>} : memref<8x1xf32, #tpu.memory_space<vmem>>, vector<8x1xf32>,
    return
  }
  func.func @transform_0(%arg0: i32) -> (i32, i32) {
    %c0_i32 = arith.constant 0 : i32
    %c0_i32_0 = arith.constant 0 : i32
    return %arg0, %c0_i32 : i32, i32
  }
  func.func @transform_1(%arg0: i32) -> (i32, i32) {
    %c0_i32 = arith.constant 0 : i32
    %c0_i32_0 = arith.constant 0 : i32
    return %arg0, %c0_i32 : i32, i32
  }
  func.func @transform_2(%arg0: i32) -> (i32, i32) {
    %c0_i32 = arith.constant 0 : i32
    %c0_i32_0 = arith.constant 0 : i32
    %c0_i32_1 = arith.constant 0 : i32
    return %c0_i32, %c0_i32_0 : i32, i32
  }
  func.func @transform_3(%arg0: i32) -> (i32, i32) {
    %c0_i32 = arith.constant 0 : i32
    %c0_i32_0 = arith.constant 0 : i32
    %c0_i32_1 = arith.constant 0 : i32
    return %c0_i32, %c0_i32_0 : i32, i32
  }
  func.func @transform_4(%arg0: i32) -> (i32, i32) {
    %c0_i32 = arith.constant 0 : i32
    %c0_i32_0 = arith.constant 0 : i32
    %c0_i32_1 = arith.constant 0 : i32
    return %c0_i32, %c0_i32_0 : i32, i32
  }
  func.func @transform_5(%arg0: i32) -> (i32, i32) {
    %c0_i32 = arith.constant 0 : i32
    %c0_i32_0 = arith.constant 0 : i32
    %c0_i32_1 = arith.constant 0 : i32
    return %c0_i32, %c0_i32_0 : i32, i32
  }
  func.func @transform_6(%arg0: i32) -> (i32, i32) {
    %c0_i32 = arith.constant 0 : i32
    %c0_i32_0 = arith.constant 0 : i32
    %c0_i32_1 = arith.constant 0 : i32
    return %c0_i32, %c0_i32_0 : i32, i32
  }
  func.func @transform_7(%arg0: i32) -> (i32, i32) {
    %c0_i32 = arith.constant 0 : i32
    %c0_i32_0 = arith.constant 0 : i32
    return %arg0, %c0_i32 : i32, i32
  }
}

</mosaic_0001>

<llo_original>
// kernel: tpu_custom_call.1
$region0: #{tpu_custom_call.1}
  #allocation0 [shape = 'u32[]', space=smem, size = 0x4, offset = 0x4, fixed_abs, tag = 'smem constant byte address 0x4 - core index']
  #allocation1 [shape = 'u32[144,128]{1,0:T(1,128)}', space=vmem, size = 0x12000, scoped, tag = 'internal scratch']
  %s0 = inlined_call_operand.vmem [shape: f32[8,32], index: 0, kind: input, shape index: {}]
  %s1 = inlined_call_operand.hbm [shape: f32[8,32], index: 1, kind: input, shape index: {}]
  %s2 = inlined_call_operand.vmem [shape: bf16[32,32], index: 2, kind: input, shape index: {}]
  %s3 = inlined_call_operand.vmem [shape: f32[1,32], index: 3, kind: input, shape index: {}]
  %s4 = inlined_call_operand.vmem [shape: bf16[32,16], index: 4, kind: input, shape index: {}]
  %s5 = inlined_call_operand.vmem [shape: f32[1,16], index: 5, kind: input, shape index: {}]
  %s6 = inlined_call_operand.vmem [shape: f32[1,16], index: 6, kind: input, shape index: {}]
  %s7 = inlined_call_operand.vmem [shape: f32[8,1], index: 7, kind: output, shape index: {}]
  %s8 = sld [smem:[#allocation0]]
  $region42: #{tpu_custom_call.1} parent=0
    _
  %s10 = ssub.s32 1, %s8
  %s11 = scalar_select 0, %s10, %s8
  $region1: #{tpu_custom_call.1} parent=0
    #allocation2 [shape = 'u8[4096]{0}', space=vmem, size = 0x1000, scoped, tag = 'input window, operand 1, single buffered']
    #allocation3 [shape = 's32[1]{0}', space=sflag, size = 0x4, scoped, tag = 'scoped memory for tpu_custom_call.1']
    %12 = vsyncpa [#allocation3], 0
    // Predicated region
    $region2: #{tpu_custom_call.1} parent=1 // pred_check
      _
    $region3: #{tpu_custom_call.1} parent=1 // pred_check_branch
      %14 = sbr.rel (0) target = $region5
    $region4: #{tpu_custom_call.1} parent=1 // pred_region
      _
    $region5: #{tpu_custom_call.1} parent=1 // pred_fallthru
      _
    // Predicated region
    $region6: #{tpu_custom_call.1} parent=1 // pred_check
      _
    $region7: #{tpu_custom_call.1} parent=1 // pred_check_branch
      %16 = sbr.rel (0) target = $region9
    $region8: #{tpu_custom_call.1} parent=1 // pred_region
      %s18 = ssub.s32 128, 128
      %19 = vsyncadd [#allocation3], %s18
      %s21 = sshll.u32 [#allocation2], 4
      %s22 = int_to_ptr.vmem [resolvable:$true] %s21
      %24 = dma.hbm_to_vmem [thread:$0]  %s1, 128, %s22, [#allocation3]
    $region9: #{tpu_custom_call.1} parent=1 // pred_fallthru
      _
    // Predicated region
    $region10: #{tpu_custom_call.1} parent=1 // pred_check
      _
    $region11: #{tpu_custom_call.1} parent=1 // pred_check_branch
      %26 = sbr.rel (0) target = $region13
    $region12: #{tpu_custom_call.1} parent=1 // pred_region
      _
    $region13: #{tpu_custom_call.1} parent=1 // pred_fallthru
      _
    // Predicated region
    $region14: #{tpu_custom_call.1} parent=1 // pred_check
      _
    $region15: #{tpu_custom_call.1} parent=1 // pred_check_branch
      %28 = sbr.rel (0) target = $region17
    $region16: #{tpu_custom_call.1} parent=1 // pred_region
      _
    $region17: #{tpu_custom_call.1} parent=1 // pred_fallthru
      _
    // Predicated region
    $region18: #{tpu_custom_call.1} parent=1 // pred_check
      _
    $region19: #{tpu_custom_call.1} parent=1 // pred_check_branch
      %30 = sbr.rel (0) target = $region21
    $region20: #{tpu_custom_call.1} parent=1 // pred_region
      _
    $region21: #{tpu_custom_call.1} parent=1 // pred_fallthru
      _
    // Predicated region
    $region22: #{tpu_custom_call.1} parent=1 // pred_check
      _
    $region23: #{tpu_custom_call.1} parent=1 // pred_check_branch
      %32 = sbr.rel (0) target = $region25
    $region24: #{tpu_custom_call.1} parent=1 // pred_region
      _
    $region25: #{tpu_custom_call.1} parent=1 // pred_fallthru
      _
    // Predicated region
    $region26: #{tpu_custom_call.1} parent=1 // pred_check
      _
    $region27: #{tpu_custom_call.1} parent=1 // pred_check_branch
      %34 = sbr.rel (0) target = $region29
    $region28: #{tpu_custom_call.1} parent=1 // pred_region
      _
    $region29: #{tpu_custom_call.1} parent=1 // pred_fallthru
      _
    // Predicated region
    $region30: #{tpu_custom_call.1} parent=1 // pred_check
      _
    $region31: #{tpu_custom_call.1} parent=1 // pred_check_branch
      %36 = sbr.rel (0) target = $region33
    $region32: #{tpu_custom_call.1} parent=1 // pred_region
      %37 = dma.done [#allocation3], 128
    $region33: #{tpu_custom_call.1} parent=1 // pred_fallthru
      _
    %v39 = vld [vmem:[%s0] sm:$0xff]
    %v40 = vld [vmem:[#allocation2] sm:$0xff]
    %v41 = vpack.c.bf16 %v40, %v39
    %v42 = vld [vmem:[%s2] sm:$0xf]
    %v43 = vld [vmem:[%s2 + $0x4] sm:$0xf]
    %v44 = vld [vmem:[%s2 + $0x8] sm:$0xf]
    %v45 = vld [vmem:[%s2 + $0xc] sm:$0xf]
    %v46 = vld [vmem:[%s3] sm:$0x1]
    %v48 = vlaneseq
    %v49 = vshrl.u32 %v48, 7
    %v50 = vsub.s32 0, %v49
    %v51 = vrot.slane %v46, %v50
    %v57 = vunpack.c.l.b16 %v42
    %v58 = vunpack.c.l.b16 %v43
    %v59 = vunpack.c.l.b16 %v44
    %v60 = vunpack.c.l.b16 %v45
    %v61 = vpack.c.b16 %v58, %v57
    %v62 = vpack.c.b16 %v60, %v59
    %vm65 = vcmask 261120
    %v67 = vsel %vm65, %v41, 0
    %69 = vmatprep.subr.bf16.mxu0 0
    %70 = vmatpush1.bf16.msra.mxu0 %v61
    %71 = vmatprep.subr.bf16.mxu0 0
    %72 = vmatpush1.bf16.msra.mxu0 %v62
    %73 = vmatprep.subr.bf16.mxu0 0
    %74 = vmatpush1.bf16.msra.mxu0 0
    %75 = vmatprep.subr.bf16.mxu0 0
    %76 = vmatpush1.bf16.msra.mxu0 0
    %77 = vmatprep.subr.bf16.mxu0 0
    %78 = vmatpush1.bf16.msra.mxu0 0
    %79 = vmatprep.subr.bf16.mxu0 0
    %80 = vmatpush1.bf16.msra.mxu0 0
    %81 = vmatprep.subr.bf16.mxu0 0
    %82 = vmatpush1.bf16.msra.mxu0 0
    %83 = vmatprep.subr.bf16.mxu0 0
    %84 = vmatpush1.bf16.msra.mxu0 0
    %85 = vmatprep.subr.bf16.mxu0 0
    %86 = vmatpush1.bf16.msra.mxu0 0
    %87 = vmatprep.subr.bf16.mxu0 0
    %88 = vmatpush1.bf16.msra.mxu0 0
    %89 = vmatprep.subr.bf16.mxu0 0
    %90 = vmatpush1.bf16.msra.mxu0 0
    %91 = vmatprep.subr.bf16.mxu0 0
    %92 = vmatpush1.bf16.msra.mxu0 0
    %93 = vmatprep.subr.bf16.mxu0 0
    %94 = vmatpush1.bf16.msra.mxu0 0
    %95 = vmatprep.subr.bf16.mxu0 0
    %96 = vmatpush1.bf16.msra.mxu0 0
    %97 = vmatprep.subr.bf16.mxu0 0
    %98 = vmatpush1.bf16.msra.mxu0 0
    %99 = vmatprep.subr.bf16.mxu0 0
    %100 = vmatpush1.bf16.msra.mxu0 0
    %101 = vmatprep.mubr.bf16.mxu0 0
    %102 = vmatmul.mubr.bf16.gmra.mrb[0].mxu0 %v67
    %v103 = vpop.f32.mrb[0].mxu0
    %v104 = vadd.f32 %v51, %v103
    %v105 = vpop.f32.mrb[0].mxu0
    %v106 = vpop.f32.mrb[0].mxu0
    %v107 = vadd.f32 %v51, %v106
    %v108 = vpop.f32.mrb[0].mxu0
    %109 = vdwg.mxu0
    %v110 = vmax.f32 %v104, 0.0
    %v111 = vmax.f32 %v107, 0.0
    %v112 = vpack.c.bf16 %v111, %v110
    %v113 = vld [vmem:[%s4] sm:$0xf]
    %v114 = vld [vmem:[%s4 + $0x4] sm:$0xf]
    %v115 = vld [vmem:[%s4 + $0x8] sm:$0xf]
    %v116 = vld [vmem:[%s4 + $0xc] sm:$0xf]
    %v117 = vld [vmem:[%s5] sm:$0x1]
    %v119 = vlaneseq
    %v120 = vshrl.u32 %v119, 7
    %v121 = vsub.s32 0, %v120
    %v122 = vrot.slane %v117, %v121
    %v128 = vunpack.c.l.b16 %v113
    %v129 = vunpack.c.l.b16 %v114
    %v130 = vunpack.c.l.b16 %v115
    %v131 = vunpack.c.l.b16 %v116
    %v132 = vpack.c.b16 %v129, %v128
    %v133 = vpack.c.b16 %v131, %v130
    %v137 = vsel %vm65, %v112, 0
    %139 = vmatprep.subr.bf16.mxu0 0
    %140 = vmatpush1.bf16.msra.mxu0 %v132
    %141 = vmatprep.subr.bf16.mxu0 0
    %142 = vmatpush1.bf16.msra.mxu0 %v133
    %143 = vmatprep.subr.bf16.mxu0 0
    %144 = vmatpush1.bf16.msra.mxu0 0
    %145 = vmatprep.subr.bf16.mxu0 0
    %146 = vmatpush1.bf16.msra.mxu0 0
    %147 = vmatprep.subr.bf16.mxu0 0
    %148 = vmatpush1.bf16.msra.mxu0 0
    %149 = vmatprep.subr.bf16.mxu0 0
    %150 = vmatpush1.bf16.msra.mxu0 0
    %151 = vmatprep.subr.bf16.mxu0 0
    %152 = vmatpush1.bf16.msra.mxu0 0
    %153 = vmatprep.subr.bf16.mxu0 0
    %154 = vmatpush1.bf16.msra.mxu0 0
    %155 = vmatprep.subr.bf16.mxu0 0
    %156 = vmatpush1.bf16.msra.mxu0 0
    %157 = vmatprep.subr.bf16.mxu0 0
    %158 = vmatpush1.bf16.msra.mxu0 0
    %159 = vmatprep.subr.bf16.mxu0 0
    %160 = vmatpush1.bf16.msra.mxu0 0
    %161 = vmatprep.subr.bf16.mxu0 0
    %162 = vmatpush1.bf16.msra.mxu0 0
    %163 = vmatprep.subr.bf16.mxu0 0
    %164 = vmatpush1.bf16.msra.mxu0 0
    %165 = vmatprep.subr.bf16.mxu0 0
    %166 = vmatpush1.bf16.msra.mxu0 0
    %167 = vmatprep.subr.bf16.mxu0 0
    %168 = vmatpush1.bf16.msra.mxu0 0
    %169 = vmatprep.subr.bf16.mxu0 0
    %170 = vmatpush1.bf16.msra.mxu0 0
    %171 = vmatprep.mubr.bf16.mxu0 0
    %172 = vmatmul.mubr.bf16.gmra.mrb[0].mxu0 %v137
    %v173 = vpop.f32.mrb[0].mxu0
    %v174 = vadd.f32 %v122, %v173
    %v175 = vpop.f32.mrb[0].mxu0
    %v176 = vpop.f32.mrb[0].mxu0
    %v177 = vadd.f32 %v122, %v176
    %v178 = vpop.f32.mrb[0].mxu0
    %179 = vdwg.mxu0
    %v180 = vmax.f32 %v174, 0.0
    %v181 = vmax.f32 %v177, 0.0
    %v182 = vld [vmem:[%s6] sm:$0x1]
    %v184 = vlaneseq
    %v185 = vshrl.u32 %v184, 7
    %v186 = vsub.s32 0, %v185
    %v187 = vrot.slane %v182, %v186
    %v189 = vmul.f32 %v180, %v187
    %v190 = vmul.f32 %v181, %v187
    %vm191 = vcmask 130048
    %v192 = vsel %vm191, %v189, 0.0
    %193 = vadd.xlane.f32.xlu0 %v192
    %v194 = vpop.xlane.xlu0 %193
    %v195 = vsel %vm191, %v190, 0.0
    %196 = vadd.xlane.f32.xlu0 %v195
    %v197 = vpop.xlane.xlu0 %196
    %v198 = vsub.f32 %v194, %v197
    %vm199 = vcmask 7168
    %200 = vst.msk [vmem:[%s7] sm:$0xff] %vm199, %v198
    // Predicated region
    $region34: #{tpu_custom_call.1} parent=1 // pred_check
      _
    $region35: #{tpu_custom_call.1} parent=1 // pred_check_branch
      %202 = sbr.rel (0) target = $region37
    $region36: #{tpu_custom_call.1} parent=1 // pred_region
      _
    $region37: #{tpu_custom_call.1} parent=1 // pred_fallthru
      _
    // Predicated region
    $region38: #{tpu_custom_call.1} parent=1 // pred_check
      _
    $region39: #{tpu_custom_call.1} parent=1 // pred_check_branch
      %204 = sbr.rel (0) target = $region41
    $region40: #{tpu_custom_call.1} parent=1 // pred_region
      _
    $region41: #{tpu_custom_call.1} parent=1 // pred_fallthru
      _
    %205 = vsyncpa [#allocation3], 1

</llo_original>
